<compile_context>
chip_gen: v5e
topology: v5e:2x2
jax: 0.10.0
libtpu: 0.0.40
codegen_flags: <defaults>
</compile_context>

<pallas_src>
import jax
import jax.numpy as jnp
from jax.experimental import pallas as pl
from jax.experimental.pallas import tpu as pltpu


def _concat_conv1x1_kernel(x_ref, w_ref, b_ref, o_ref):
    # x_ref: (C_in, T_hw)   -- spatial tile of one batch element (NCHW-native)
    # w_ref: (C_tot, C_in)  -- fused weights of ALL nets (resident in VMEM)
    # b_ref: (C_tot, 1)     -- fused biases
    # o_ref: (C_tot, T_hw)  -- all nets' outputs, channel-concatenated by rows
    acc = jnp.dot(w_ref[...], x_ref[...], preferred_element_type=jnp.float32)
    o_ref[...] = (acc + b_ref[...]).astype(o_ref.dtype)


def _pick_spatial_tile(hw, cap):
    """Largest tile <= cap that divides hw and is a multiple of 128.

    Falls back to the full extent (always legal: block == full dim)."""
    if hw <= cap:
        return hw
    t = cap - (cap % 128)
    while t >= 128:
        if hw % t == 0:
            return t
        t -= 128
    return hw


def concat_forward(x_nchw, w_stack, b_stack, *, tile_hw=2048, out_dtype=None):
    """Equivalent of Concat([Conv2d(C_in, C_out, 1) for _ in range(num_nets)]).

    x_nchw : (N, C_in, H, W)
    w_stack: (num_nets, C_in, C_out)   (transposed 1x1 conv weights)
    b_stack: (num_nets, 1, C_out)
    returns (N, num_nets*C_out, H, W)
    """
    N, C_in, H, W = x_nchw.shape
    num_nets, _, C_out = w_stack.shape
    C_tot = num_nets * C_out
    HW = H * W
    out_dtype = x_nchw.dtype if out_dtype is None else out_dtype

    # Free (contiguous) reshape of the NCHW activation — no transpose traffic.
    x_flat = x_nchw.reshape(N, C_in, HW)

    # Fuse all nets: (num_nets, C_in, C_out) -> (C_tot, C_in); biases -> (C_tot, 1).
    # Tiny one-off reshapes of the weights; no activation-sized data movement.
    w_fused = jnp.transpose(w_stack, (0, 2, 1)).reshape(C_tot, C_in)
    b_fused = b_stack.reshape(C_tot, 1)

    T_hw = _pick_spatial_tile(HW, tile_hw)
    grid = (N, HW // T_hw)

    out_flat = pl.pallas_call(
        _concat_conv1x1_kernel,
        out_shape=jax.ShapeDtypeStruct((N, C_tot, HW), out_dtype),
        grid_spec=pltpu.PrefetchScalarGridSpec(
            num_scalar_prefetch=0,
            grid=grid,
            in_specs=[
                # x: batch dim squeezed away; (C_in, T_hw) tile per step.
                pl.BlockSpec((pl.Squeezed(), C_in, T_hw),
                             lambda n, j: (n, 0, j)),
                # fused weights / bias: constant index_map -> stay resident.
                pl.BlockSpec((C_tot, C_in), lambda n, j: (0, 0)),
                pl.BlockSpec((C_tot, 1), lambda n, j: (0, 0)),
            ],
            # Output is natively NCHW: rows = concatenated channels of all nets.
            out_specs=pl.BlockSpec((pl.Squeezed(), C_tot, T_hw),
                                   lambda n, j: (n, 0, j)),
        ),
        compiler_params=pltpu.CompilerParams(
            # Both axes independent: shards across megacore / 2 TCs on v7x.
            dimension_semantics=("parallel", "parallel"),
            # Above the 32 MiB scoped default, below v7x's 64 MiB physical.
            vmem_limit_bytes=48 * 1024 * 1024,
        ),
    )(x_flat, w_fused, b_fused)

    # Free reshape back to (N, C_tot, H, W).
    return out_flat.reshape(N, C_tot, H, W)


def _reference(x_nchw, w_stack, b_stack):
    # Pure-JAX reference: per-net 1x1 conv then concat along channel dim.
    N, C_in, H, W = x_nchw.shape
    x_flat = jnp.transpose(x_nchw, (0, 2, 3, 1)).reshape(-1, C_in)
    outs = []
    for i in range(w_stack.shape[0]):
        o = x_flat @ w_stack[i] + b_stack[i]
        o = o.reshape(N, H, W, -1).transpose(0, 3, 1, 2)
        outs.append(o)
    return jnp.concatenate(outs, axis=1)


if __name__ == "__main__":
    # Small shapes: batch=2, in-channels=32, spatial=16x16, two nets with
    # 128 output channels each (C_tot = 256 concatenated channels).
    N, C_in, H, W = 2, 32, 16, 16
    num_nets, C_out = 2, 128

    key = jax.random.PRNGKey(0)
    kx, kw, kb = jax.random.split(key, 3)
    x = jax.random.normal(kx, (N, C_in, H, W), dtype=jnp.float32)
    w_stack = jax.random.normal(kw, (num_nets, C_in, C_out), dtype=jnp.float32) * 0.05
    b_stack = jax.random.normal(kb, (num_nets, 1, C_out), dtype=jnp.float32) * 0.1

    out = jax.block_until_ready(concat_forward(x, w_stack, b_stack))
    ref = _reference(x, w_stack, b_stack)

    assert out.shape == (N, num_nets * C_out, H, W), out.shape
    assert jnp.allclose(out, ref, atol=1e-4, rtol=1e-4), "mismatch vs reference"
    print("KERNEL_OK")
</pallas_src>

<mosaic_0001>
module attributes {stable_mosaic.version = 11 : i64} {
  func.func @_concat_conv1x1_kernel(%arg0: i32, %arg1: i32, %arg2: memref<1x32x256xf32, #tpu.memory_space<vmem>>, %arg3: memref<256x32xf32, #tpu.memory_space<vmem>>, %arg4: memref<256x1xf32, #tpu.memory_space<vmem>>, %arg5: memref<1x256x256xf32, #tpu.memory_space<vmem>>) attributes {dimension_semantics = [#tpu.dimension_semantics<parallel>, #tpu.dimension_semantics<parallel>], iteration_bounds = array<i64: 2, 1>, scalar_prefetch = 0 : i64, scratch_operands = 0 : i64, tpu.core_type = #tpu.core_type<tc>, window_params = [{transform_indices = @transform_0, window_bounds = array<i64: 1, 32, 256>}, {pipeline_mode = #tpu.pipeline_mode<synchronous>, transform_indices = @transform_1, window_bounds = array<i64: 256, 32>}, {pipeline_mode = #tpu.pipeline_mode<synchronous>, transform_indices = @transform_2, window_bounds = array<i64: 256, 1>}, {transform_indices = @transform_3, window_bounds = array<i64: 1, 256, 256>}]} {
    %c0 = arith.constant 0 : index
    %c0_0 = arith.constant 0 : index
    %0 = vector.load %arg3[%c0, %c0_0] : memref<256x32xf32, #tpu.memory_space<vmem>>, vector<256x32xf32>
    %c0_1 = arith.constant 0 : index
    %c0_2 = arith.constant 0 : index
    %c0_3 = arith.constant 0 : index
    %1 = vector.load %arg2[%c0_1, %c0_2, %c0_3] : memref<1x32x256xf32, #tpu.memory_space<vmem>>, vector<1x32x256xf32>
    %2 = vector.shape_cast %1 : vector<1x32x256xf32> to vector<32x256xf32>
    %cst = arith.constant dense<0.000000e+00> : vector<256x256xf32>
    %3 = tpu.matmul %0, %2, %cst {dimension_numbers = #tpu.dot_dimension_numbers<[1], [0], [0], [1], [0, 0, 1, 1], [], []>} : vector<256x32xf32>, vector<32x256xf32>, vector<256x256xf32> -> vector<256x256xf32>
    %c0_4 = arith.constant 0 : index
    %c0_5 = arith.constant 0 : index
    %4 = vector.load %arg4[%c0_4, %c0_5] : memref<256x1xf32, #tpu.memory_space<vmem>>, vector<256x1xf32>
    %5 = vector.broadcast %4 : vector<256x1xf32> to vector<256x256xf32>
    %6 = arith.addf %3, %5 : vector<256x256xf32>
    %c0_6 = arith.constant 0 : index
    %c0_7 = arith.constant 0 : index
    %c0_8 = arith.constant 0 : index
    %7 = vector.load %arg5[%c0_6, %c0_7, %c0_8] : memref<1x256x256xf32, #tpu.memory_space<vmem>>, vector<1x256x256xf32>
    %8 = vector.shape_cast %7 : vector<1x256x256xf32> to vector<256x256xf32>
    %9 = vector.shape_cast %6 : vector<256x256xf32> to vector<1x256x256xf32>
    tpu.vector_store %arg5[%c0_6, %c0_7, %c0_8], %9 {strides = array<i32>} : memref<1x256x256xf32, #tpu.memory_space<vmem>>, vector<1x256x256xf32>,
    return
  }
  func.func @transform_0(%arg0: i32, %arg1: i32) -> (i32, i32, i32) {
    %c0_i32 = arith.constant 0 : i32
    %c0_i32_0 = arith.constant 0 : i32
    return %arg0, %c0_i32, %arg1 : i32, i32, i32
  }
  func.func @transform_1(%arg0: i32, %arg1: i32) -> (i32, i32) {
    %c0_i32 = arith.constant 0 : i32
    %c0_i32_0 = arith.constant 0 : i32
    %c0_i32_1 = arith.constant 0 : i32
    return %c0_i32, %c0_i32_0 : i32, i32
  }
  func.func @transform_2(%arg0: i32, %arg1: i32) -> (i32, i32) {
    %c0_i32 = arith.constant 0 : i32
    %c0_i32_0 = arith.constant 0 : i32
    %c0_i32_1 = arith.constant 0 : i32
    return %c0_i32, %c0_i32_0 : i32, i32
  }
  func.func @transform_3(%arg0: i32, %arg1: i32) -> (i32, i32, i32) {
    %c0_i32 = arith.constant 0 : i32
    %c0_i32_0 = arith.constant 0 : i32
    return %arg0, %c0_i32, %arg1 : i32, i32, i32
  }
}

</mosaic_0001>

<llo_original>
// kernel: tpu_custom_call.1
$region0: #{tpu_custom_call.1}
  #allocation0 [shape = 'u32[]', space=smem, size = 0x4, offset = 0x4, fixed_abs, tag = 'smem constant byte address 0x4 - core index']
  #allocation1 [shape = 'u32[72,128]{1,0:T(1,128)}', space=vmem, size = 0x9000, scoped, tag = 'internal scratch']
  %s0 = inlined_call_operand.vmem [shape: f32[2,32,256], index: 0, kind: input, shape index: {}]
  %s1 = inlined_call_operand.vmem [shape: f32[256,32], index: 1, kind: input, shape index: {}]
  %s2 = inlined_call_operand.vmem [shape: f32[256,1], index: 2, kind: input, shape index: {}]
  %s3 = inlined_call_operand.hbm [shape: f32[2,256,256], index: 3, kind: output, shape index: {}]
  %s4 = sld [smem:[#allocation0]]
  $region45: #{tpu_custom_call.1} parent=0
    _
  %s6 = ssub.s32 1, %s4
  %s7 = scalar_select 0, %s6, %s4
  $region1: #{tpu_custom_call.1} parent=0
    #allocation2 [shape = 'u8[524288]{0}', space=vmem, size = 0x80000, scoped, tag = 'output window, operand 0']
    #allocation3 [shape = 's32[2]{0}', space=sflag, size = 0x8, scoped, tag = 'scoped memory for tpu_custom_call.1']
    %8 = vsyncpa [#allocation3], 0
    %s9 = scalar_lea.sflag [#allocation3], 1
    %10 = vsyncpa %s9, 0
    loop: start=0, step=1, limit=4
    $region2: #{tpu_custom_call.1} parent=1 // loop_pre_header
      _
    $region3: #{tpu_custom_call.1} parent=1 // loop_header
      %s12 = sphi 0, %s16
      %p13 = scmp.ge.s32.totalorder %s12, 4
      %s19 = sphi 0, %s31
      %s20 = sphi 0, %s27
      %s21 = sphi 0, %s19
      %s22 = sphi 0, %s20
      %s23 = sphi 0, %s21
      %s24 = sphi 0, %s22
      %s36 = sphi 0, %s38
      %s39 = sphi 0, %s36
      %s40 = sphi 0, %s39
      %s56 = sphi 0, %s40
      %s60 = sphi 0, %s60
      %s62 = sphi 0, %s60
      %s63 = sphi 0, %s62
      %s77 = sphi 0, %s63
      %s81 = sphi 0, %s81
      %s83 = sphi 0, %s81
      %s84 = sphi 0, %s83
      %s98 = sphi 0, %s84
      %s106 = sphi 0, %s108
      %s109 = sphi 0, %s106
      %s110 = sphi 0, %s109
      %s126 = sphi 0, %s110
    $region4: #{tpu_custom_call.1} parent=1 // loop_header_branch
      %15 = sbr.rel (%p13) target = $region8
    $region5: #{tpu_custom_call.1} parent=1 // loop_body
      %s17 = ssub.s32 %s12, 1
      %s18 = ssub.s32 %s12, 2
      %s25 = sadd.s32 1, %s20
      %p26 = scmp.ge.s32.totalorder %s25, 1
      %s27 = scalar_select %p26, 0, %s25
      %s28 = sadd.s32 1, %s19
      %s29 = scalar_select %p26, %s28, %s19
      %p30 = scmp.ge.s32.totalorder %s29, 2
      %s31 = scalar_select %p30, 0, %s29
      %s32 = ssub.s32 %s19, %s31
      %s33 = ssub.s32 %s20, %s27
      %s34 = sor.u32 %s32, %s33
      %p35 = scmp.eq.s32.totalorder %s34, 0
      %s37 = sadd.s32 %s36, 1
      %s38 = scalar_select %p35, %s36, %s37
      %p41 = pneg %p35
      %p42 = scmp.eq.s32.totalorder %s12, 1
      %p43 = por %p41, %p42
      %p44 = scmp.ne.s32.totalorder %s36, %s39
      %p45 = scmp.eq.s32.totalorder %s12, 0
      %p46 = por %p44, %p45
      %p47 = scmp.ne.s32.totalorder %s36, %s39
      %p48 = scmp.eq.s32.totalorder %s17, 1
      %p49 = por %p47, %p48
      %p50 = scmp.ne.s32.totalorder %s39, %s40
      %p51 = scmp.eq.s32.totalorder %s17, 0
      %p52 = por %p50, %p51
      %p53 = scmp.ne.s32.totalorder %s39, %s40
      %p54 = scmp.eq.s32.totalorder %s18, 1
      %p55 = por %p53, %p54
      %p57 = scmp.ne.s32.totalorder %s40, %s56
      %p58 = scmp.eq.s32.totalorder %s18, 0
      %p59 = por %p57, %p58
      %s61 = sadd.s32 %s60, 1
      %p64 = scmp.eq.s32.totalorder %s12, 1
      %p65 = scmp.ne.s32.totalorder %s60, %s62
      %p66 = scmp.eq.s32.totalorder %s12, 0
      %p67 = por %p65, %p66
      %p68 = scmp.ne.s32.totalorder %s60, %s62
      %p69 = scmp.eq.s32.totalorder %s17, 1
      %p70 = por %p68, %p69
      %p71 = scmp.ne.s32.totalorder %s62, %s63
      %p72 = scmp.eq.s32.totalorder %s17, 0
      %p73 = por %p71, %p72
      %p74 = scmp.ne.s32.totalorder %s62, %s63
      %p75 = scmp.eq.s32.totalorder %s18, 1
      %p76 = por %p74, %p75
      %p78 = scmp.ne.s32.totalorder %s63, %s77
      %p79 = scmp.eq.s32.totalorder %s18, 0
      %p80 = por %p78, %p79
      %s82 = sadd.s32 %s81, 1
      %p85 = scmp.eq.s32.totalorder %s12, 1
      %p86 = scmp.ne.s32.totalorder %s81, %s83
      %p87 = scmp.eq.s32.totalorder %s12, 0
      %p88 = por %p86, %p87
      %p89 = scmp.ne.s32.totalorder %s81, %s83
      %p90 = scmp.eq.s32.totalorder %s17, 1
      %p91 = por %p89, %p90
      %p92 = scmp.ne.s32.totalorder %s83, %s84
      %p93 = scmp.eq.s32.totalorder %s17, 0
      %p94 = por %p92, %p93
      %p95 = scmp.ne.s32.totalorder %s83, %s84
      %p96 = scmp.eq.s32.totalorder %s18, 1
      %p97 = por %p95, %p96
      %p99 = scmp.ne.s32.totalorder %s84, %s98
      %p100 = scmp.eq.s32.totalorder %s18, 0
      %p101 = por %p99, %p100
      %s102 = ssub.s32 %s19, %s31
      %s103 = ssub.s32 %s20, %s27
      %s104 = sor.u32 %s102, %s103
      %p105 = scmp.eq.s32.totalorder %s104, 0
      %s107 = sadd.s32 %s106, 1
      %s108 = scalar_select %p105, %s106, %s107
      %p111 = pneg %p105
      %p112 = scmp.eq.s32.totalorder %s12, 1
      %p113 = por %p111, %p112
      %p114 = scmp.ne.s32.totalorder %s106, %s109
      %p115 = scmp.eq.s32.totalorder %s12, 0
      %p116 = por %p114, %p115
      %p117 = scmp.ne.s32.totalorder %s106, %s109
      %p118 = scmp.eq.s32.totalorder %s17, 1
      %p119 = por %p117, %p118
      %p120 = scmp.ne.s32.totalorder %s109, %s110
      %p121 = scmp.eq.s32.totalorder %s17, 0
      %p122 = por %p120, %p121
      %p123 = scmp.ne.s32.totalorder %s109, %s110
      %p124 = scmp.eq.s32.totalorder %s18, 1
      %p125 = por %p123, %p124
      %p127 = scmp.ne.s32.totalorder %s110, %s126
      %p128 = scmp.eq.s32.totalorder %s18, 0
      %p129 = por %p127, %p128
      %p130 = scmp.le.s32.totalorder 1, %s12
      %p131 = scmp.lt.s32.totalorder %s12, 3
      %p132 = pnand %p130, %p131
      %p133 = pneg %p132
      // Predicated region
      $region9: #{tpu_custom_call.1} parent=5 // pred_check
        _
      $region10: #{tpu_custom_call.1} parent=5 // pred_check_branch
        %135 = sbr.rel (%p132) target = $region12
      $region11: #{tpu_custom_call.1} parent=5 // pred_region
        %s136 = ssub.s32 %s12, 1
        // Predicated region
        $region13: #{tpu_custom_call.1} parent=11 // pred_check
          %p137 = pneg %p73
        $region14: #{tpu_custom_call.1} parent=11 // pred_check_branch
          %139 = sbr.rel (%p137) target = $region16
        $region15: #{tpu_custom_call.1} parent=11 // pred_region
          _
        $region16: #{tpu_custom_call.1} parent=11 // pred_fallthru
          _
        // Predicated region
        $region17: #{tpu_custom_call.1} parent=11 // pred_check
          %p140 = pneg %p94
        $region18: #{tpu_custom_call.1} parent=11 // pred_check_branch
          %142 = sbr.rel (%p140) target = $region20
        $region19: #{tpu_custom_call.1} parent=11 // pred_region
          _
        $region20: #{tpu_custom_call.1} parent=11 // pred_fallthru
          _
      $region12: #{tpu_custom_call.1} parent=5 // pred_fallthru
        _
      %p143 = scmp.lt.s32.totalorder %s12, 2
      // Predicated region
      $region21: #{tpu_custom_call.1} parent=5 // pred_check
        %p144 = pneg %p143
      $region22: #{tpu_custom_call.1} parent=5 // pred_check_branch
        %146 = sbr.rel (%p144) target = $region24
      $region23: #{tpu_custom_call.1} parent=5 // pred_region
        // Predicated region
        $region25: #{tpu_custom_call.1} parent=23 // pred_check
          %p147 = pneg %p46
        $region26: #{tpu_custom_call.1} parent=23 // pred_check_branch
          %149 = sbr.rel (%p147) target = $region28
        $region27: #{tpu_custom_call.1} parent=23 // pred_region
          %s150 = smul.u32 2, %s20
          %p151 = scmp.lt.s32.totalorder %s19, 1
          %s152 = scalar_select %p151, %s19, 1
          %p153 = scmp.lt.s32.totalorder %s150, 1
          %s154 = scalar_select %p153, %s150, 1
          %s155 = smul.addr %s152, 8
          %s156 = sadd.s32 %s154, %s155
          %s157 = smul.addr %s156, 8
          %s158 = scalar_lea.vmem %s0, %s157
          %s159 = smul.u32 2, %s20
        $region28: #{tpu_custom_call.1} parent=23 // pred_fallthru
          _
      $region24: #{tpu_custom_call.1} parent=5 // pred_fallthru
        _
      %p160 = scmp.le.s32.totalorder 1, %s12
      %p161 = scmp.lt.s32.totalorder %s12, 3
      %p162 = pnand %p160, %p161
      %p163 = pneg %p162
      // Predicated region
      $region29: #{tpu_custom_call.1} parent=5 // pred_check
        _
      $region30: #{tpu_custom_call.1} parent=5 // pred_check_branch
        %165 = sbr.rel (%p162) target = $region32
      $region31: #{tpu_custom_call.1} parent=5 // pred_region
        %s166 = ssub.s32 %s12, 1
        %s167 = smul.u32 2, %s22
        %p168 = scmp.lt.s32.totalorder %s21, 1
        %s169 = scalar_select %p168, %s21, 1
        %p170 = scmp.lt.s32.totalorder %s167, 1
        %s171 = scalar_select %p170, %s167, 1
        %s172 = smul.addr %s169, 8
        %s173 = sadd.s32 %s171, %s172
        %s174 = smul.addr %s173, 8
        %s175 = scalar_lea.vmem %s0, %s174
        %p176 = pneg %p52
        %p177 = pneg %p49
        %p178 = pneg %p73
        %p179 = pneg %p70
        %p180 = pneg %p94
        %p181 = pneg %p91
        %p182 = pneg %p122
        %p183 = pneg %p119
        %s184 = sand.u32 %s109, 1
        %s185 = scalar_lea.sflag [#allocation3], %s184
        %s186 = sand.u32 %s109, 1
        %s187 = smul.addr %s186, 512
        %s188 = scalar_lea.vmem [#allocation2], %s187
        %s189 = smul.u32 2, %s22
        %p190 = scmp.lt.s32.totalorder %s21, 1
        %s191 = scalar_select %p190, %s21, 1
        %p192 = scmp.lt.s32.totalorder %s189, 1
        %s193 = scalar_select %p192, %s189, 1
        %s194 = smul.addr %s191, 8
        %s195 = sadd.s32 %s193, %s194
        %s196 = smul.addr %s195, 8
        %s197 = scalar_lea.vmem %s0, %s196
        %s198 = smul.u32 2, %s22
        %s199 = smul.u32 2, %s22
        %v200 = vld [vmem:[%s1] sm:$0xff]
        %v201 = vld [vmem:[%s1 + $0x8] sm:$0xff]
        %v202 = vld [vmem:[%s1 + $0x10] sm:$0xff]
        %v203 = vld [vmem:[%s1 + $0x18] sm:$0xff]
        %v204 = vld [vmem:[%s1 + $0x20] sm:$0xff]
        %v205 = vld [vmem:[%s1 + $0x28] sm:$0xff]
        %v206 = vld [vmem:[%s1 + $0x30] sm:$0xff]
        %v207 = vld [vmem:[%s1 + $0x38] sm:$0xff]
        %v208 = vld [vmem:[%s1 + $0x40] sm:$0xff]
        %v209 = vld [vmem:[%s1 + $0x48] sm:$0xff]
        %v210 = vld [vmem:[%s1 + $0x50] sm:$0xff]
        %v211 = vld [vmem:[%s1 + $0x58] sm:$0xff]
        %v212 = vld [vmem:[%s1 + $0x60] sm:$0xff]
        %v213 = vld [vmem:[%s1 + $0x68] sm:$0xff]
        %v214 = vld [vmem:[%s1 + $0x70] sm:$0xff]
        %v215 = vld [vmem:[%s1 + $0x78] sm:$0xff]
        %v216 = vld [vmem:[%s1 + $0x80] sm:$0xff]
        %v217 = vld [vmem:[%s1 + $0x88] sm:$0xff]
        %v218 = vld [vmem:[%s1 + $0x90] sm:$0xff]
        %v219 = vld [vmem:[%s1 + $0x98] sm:$0xff]
        %v220 = vld [vmem:[%s1 + $0xa0] sm:$0xff]
        %v221 = vld [vmem:[%s1 + $0xa8] sm:$0xff]
        %v222 = vld [vmem:[%s1 + $0xb0] sm:$0xff]
        %v223 = vld [vmem:[%s1 + $0xb8] sm:$0xff]
        %v224 = vld [vmem:[%s1 + $0xc0] sm:$0xff]
        %v225 = vld [vmem:[%s1 + $0xc8] sm:$0xff]
        %v226 = vld [vmem:[%s1 + $0xd0] sm:$0xff]
        %v227 = vld [vmem:[%s1 + $0xd8] sm:$0xff]
        %v228 = vld [vmem:[%s1 + $0xe0] sm:$0xff]
        %v229 = vld [vmem:[%s1 + $0xe8] sm:$0xff]
        %v230 = vld [vmem:[%s1 + $0xf0] sm:$0xff]
        %v231 = vld [vmem:[%s1 + $0xf8] sm:$0xff]
        %v232 = vld [vmem:[%s197] sm:$0xff]
        %v233 = vld [vmem:[%s197 + $0x8] sm:$0xff]
        %v234 = vld [vmem:[%s197 + $0x10] sm:$0xff]
        %v235 = vld [vmem:[%s197 + $0x18] sm:$0xff]
        %v236 = vld [vmem:[%s197 + $0x20] sm:$0xff]
        %v237 = vld [vmem:[%s197 + $0x28] sm:$0xff]
        %v238 = vld [vmem:[%s197 + $0x30] sm:$0xff]
        %v239 = vld [vmem:[%s197 + $0x38] sm:$0xff]
        %v240 = vld [vmem:[%s2] sm:$0xff]
        %v241 = vld [vmem:[%s2 + $0x8] sm:$0xff]
        %v242 = vld [vmem:[%s2 + $0x10] sm:$0xff]
        %v243 = vld [vmem:[%s2 + $0x18] sm:$0xff]
        %v244 = vld [vmem:[%s2 + $0x20] sm:$0xff]
        %v245 = vld [vmem:[%s2 + $0x28] sm:$0xff]
        %v246 = vld [vmem:[%s2 + $0x30] sm:$0xff]
        %v247 = vld [vmem:[%s2 + $0x38] sm:$0xff]
        %v248 = vld [vmem:[%s2 + $0x40] sm:$0xff]
        %v249 = vld [vmem:[%s2 + $0x48] sm:$0xff]
        %v250 = vld [vmem:[%s2 + $0x50] sm:$0xff]
        %v251 = vld [vmem:[%s2 + $0x58] sm:$0xff]
        %v252 = vld [vmem:[%s2 + $0x60] sm:$0xff]
        %v253 = vld [vmem:[%s2 + $0x68] sm:$0xff]
        %v254 = vld [vmem:[%s2 + $0x70] sm:$0xff]
        %v255 = vld [vmem:[%s2 + $0x78] sm:$0xff]
        %v256 = vld [vmem:[%s2 + $0x80] sm:$0xff]
        %v257 = vld [vmem:[%s2 + $0x88] sm:$0xff]
        %v258 = vld [vmem:[%s2 + $0x90] sm:$0xff]
        %v259 = vld [vmem:[%s2 + $0x98] sm:$0xff]
        %v260 = vld [vmem:[%s2 + $0xa0] sm:$0xff]
        %v261 = vld [vmem:[%s2 + $0xa8] sm:$0xff]
        %v262 = vld [vmem:[%s2 + $0xb0] sm:$0xff]
        %v263 = vld [vmem:[%s2 + $0xb8] sm:$0xff]
        %v264 = vld [vmem:[%s2 + $0xc0] sm:$0xff]
        %v265 = vld [vmem:[%s2 + $0xc8] sm:$0xff]
        %v266 = vld [vmem:[%s2 + $0xd0] sm:$0xff]
        %v267 = vld [vmem:[%s2 + $0xd8] sm:$0xff]
        %v268 = vld [vmem:[%s2 + $0xe0] sm:$0xff]
        %v269 = vld [vmem:[%s2 + $0xe8] sm:$0xff]
        %v270 = vld [vmem:[%s2 + $0xf0] sm:$0xff]
        %v271 = vld [vmem:[%s2 + $0xf8] sm:$0xff]
        %273 = vset.pattern.permute.xlu0 0
        %274 = vperm.xlu0 %273, %v240
        %v275 = vpop.permute.xlu0 %274
        %278 = vset.pattern.permute.xlu0 0
        %279 = vperm.xlu0 %278, %v241
        %v280 = vpop.permute.xlu0 %279
        %283 = vset.pattern.permute.xlu0 0
        %284 = vperm.xlu0 %283, %v242
        %v285 = vpop.permute.xlu0 %284
        %288 = vset.pattern.permute.xlu0 0
        %289 = vperm.xlu0 %288, %v243
        %v290 = vpop.permute.xlu0 %289
        %293 = vset.pattern.permute.xlu0 0
        %294 = vperm.xlu0 %293, %v244
        %v295 = vpop.permute.xlu0 %294
        %298 = vset.pattern.permute.xlu0 0
        %299 = vperm.xlu0 %298, %v245
        %v300 = vpop.permute.xlu0 %299
        %303 = vset.pattern.permute.xlu0 0
        %304 = vperm.xlu0 %303, %v246
        %v305 = vpop.permute.xlu0 %304
        %308 = vset.pattern.permute.xlu0 0
        %309 = vperm.xlu0 %308, %v247
        %v310 = vpop.permute.xlu0 %309
        %313 = vset.pattern.permute.xlu0 0
        %314 = vperm.xlu0 %313, %v248
        %v315 = vpop.permute.xlu0 %314
        %318 = vset.pattern.permute.xlu0 0
        %319 = vperm.xlu0 %318, %v249
        %v320 = vpop.permute.xlu0 %319
        %323 = vset.pattern.permute.xlu0 0
        %324 = vperm.xlu0 %323, %v250
        %v325 = vpop.permute.xlu0 %324
        %328 = vset.pattern.permute.xlu0 0
        %329 = vperm.xlu0 %328, %v251
        %v330 = vpop.permute.xlu0 %329
        %333 = vset.pattern.permute.xlu0 0
        %334 = vperm.xlu0 %333, %v252
        %v335 = vpop.permute.xlu0 %334
        %338 = vset.pattern.permute.xlu0 0
        %339 = vperm.xlu0 %338, %v253
        %v340 = vpop.permute.xlu0 %339
        %343 = vset.pattern.permute.xlu0 0
        %344 = vperm.xlu0 %343, %v254
        %v345 = vpop.permute.xlu0 %344
        %348 = vset.pattern.permute.xlu0 0
        %349 = vperm.xlu0 %348, %v255
        %v350 = vpop.permute.xlu0 %349
        %353 = vset.pattern.permute.xlu0 0
        %354 = vperm.xlu0 %353, %v256
        %v355 = vpop.permute.xlu0 %354
        %358 = vset.pattern.permute.xlu0 0
        %359 = vperm.xlu0 %358, %v257
        %v360 = vpop.permute.xlu0 %359
        %363 = vset.pattern.permute.xlu0 0
        %364 = vperm.xlu0 %363, %v258
        %v365 = vpop.permute.xlu0 %364
        %368 = vset.pattern.permute.xlu0 0
        %369 = vperm.xlu0 %368, %v259
        %v370 = vpop.permute.xlu0 %369
        %373 = vset.pattern.permute.xlu0 0
        %374 = vperm.xlu0 %373, %v260
        %v375 = vpop.permute.xlu0 %374
        %378 = vset.pattern.permute.xlu0 0
        %379 = vperm.xlu0 %378, %v261
        %v380 = vpop.permute.xlu0 %379
        %383 = vset.pattern.permute.xlu0 0
        %384 = vperm.xlu0 %383, %v262
        %v385 = vpop.permute.xlu0 %384
        %388 = vset.pattern.permute.xlu0 0
        %389 = vperm.xlu0 %388, %v263
        %v390 = vpop.permute.xlu0 %389
        %393 = vset.pattern.permute.xlu0 0
        %394 = vperm.xlu0 %393, %v264
        %v395 = vpop.permute.xlu0 %394
        %398 = vset.pattern.permute.xlu0 0
        %399 = vperm.xlu0 %398, %v265
        %v400 = vpop.permute.xlu0 %399
        %403 = vset.pattern.permute.xlu0 0
        %404 = vperm.xlu0 %403, %v266
        %v405 = vpop.permute.xlu0 %404
        %408 = vset.pattern.permute.xlu0 0
        %409 = vperm.xlu0 %408, %v267
        %v410 = vpop.permute.xlu0 %409
        %413 = vset.pattern.permute.xlu0 0
        %414 = vperm.xlu0 %413, %v268
        %v415 = vpop.permute.xlu0 %414
        %418 = vset.pattern.permute.xlu0 0
        %419 = vperm.xlu0 %418, %v269
        %v420 = vpop.permute.xlu0 %419
        %423 = vset.pattern.permute.xlu0 0
        %424 = vperm.xlu0 %423, %v270
        %v425 = vpop.permute.xlu0 %424
        %428 = vset.pattern.permute.xlu0 0
        %429 = vperm.xlu0 %428, %v271
        %v430 = vpop.permute.xlu0 %429
        %vm432 = vcmask 261120
        %v434 = vsel %vm432, %v200, 0
        %v437 = vsel %vm432, %v201, 0
        %v440 = vsel %vm432, %v202, 0
        %v443 = vsel %vm432, %v203, 0
        %v446 = vsel %vm432, %v204, 0
        %v449 = vsel %vm432, %v205, 0
        %v452 = vsel %vm432, %v206, 0
        %v455 = vsel %vm432, %v207, 0
        %v458 = vsel %vm432, %v208, 0
        %v461 = vsel %vm432, %v209, 0
        %v464 = vsel %vm432, %v210, 0
        %v467 = vsel %vm432, %v211, 0
        %v470 = vsel %vm432, %v212, 0
        %v473 = vsel %vm432, %v213, 0
        %v476 = vsel %vm432, %v214, 0
        %v479 = vsel %vm432, %v215, 0
        %v482 = vsel %vm432, %v216, 0
        %v485 = vsel %vm432, %v217, 0
        %v488 = vsel %vm432, %v218, 0
        %v491 = vsel %vm432, %v219, 0
        %v494 = vsel %vm432, %v220, 0
        %v497 = vsel %vm432, %v221, 0
        %v500 = vsel %vm432, %v222, 0
        %v503 = vsel %vm432, %v223, 0
        %v506 = vsel %vm432, %v224, 0
        %v509 = vsel %vm432, %v225, 0
        %v512 = vsel %vm432, %v226, 0
        %v515 = vsel %vm432, %v227, 0
        %v518 = vsel %vm432, %v228, 0
        %v521 = vsel %vm432, %v229, 0
        %v524 = vsel %vm432, %v230, 0
        %v527 = vsel %vm432, %v231, 0
        %529 = vmatpush.msra.mxu0 0.0
        %530 = vmatpush.msra.mxu0 0.0
        %531 = vmatpush.msra.mxu0 0.0
        %532 = vmatpush.msra.mxu0 0.0
        %533 = vmatpush.msra.mxu0 0.0
        %534 = vmatpush.msra.mxu0 0.0
        %535 = vmatpush.msra.mxu0 0.0
        %536 = vmatpush.msra.mxu0 0.0
        %537 = vmatpush.msra.mxu0 0.0
        %538 = vmatpush.msra.mxu0 0.0
        %539 = vmatpush.msra.mxu0 0.0
        %540 = vmatpush.msra.mxu0 0.0
        %541 = vmatpush.msra.mxu0 %v238
        %542 = vmatpush.msra.mxu0 %v236
        %543 = vmatpush.msra.mxu0 %v234
        %544 = vmatpush.msra.mxu0 %v232
        %545 = vmatmul.f32.gmra.mxu0 %v434
        %v546 = vpop.f32.mrf.mxu0
        %v547 = vadd.f32 %v275, %v546
        %548 = vmatmul.f32.gmra.mxu0 %v437
        %v549 = vpop.f32.mrf.mxu0
        %v550 = vadd.f32 %v280, %v549
        %551 = vmatmul.f32.gmra.mxu0 %v440
        %v552 = vpop.f32.mrf.mxu0
        %v553 = vadd.f32 %v285, %v552
        %554 = vmatmul.f32.gmra.mxu0 %v443
        %v555 = vpop.f32.mrf.mxu0
        %v556 = vadd.f32 %v290, %v555
        %557 = vmatmul.f32.gmra.mxu0 %v446
        %v558 = vpop.f32.mrf.mxu0
        %v559 = vadd.f32 %v295, %v558
        %560 = vmatmul.f32.gmra.mxu0 %v449
        %v561 = vpop.f32.mrf.mxu0
        %v562 = vadd.f32 %v300, %v561
        %563 = vmatmul.f32.gmra.mxu0 %v452
        %v564 = vpop.f32.mrf.mxu0
        %v565 = vadd.f32 %v305, %v564
        %566 = vmatmul.f32.gmra.mxu0 %v455
        %v567 = vpop.f32.mrf.mxu0
        %v568 = vadd.f32 %v310, %v567
        %569 = vmatmul.f32.gmra.mxu0 %v458
        %v570 = vpop.f32.mrf.mxu0
        %v571 = vadd.f32 %v315, %v570
        %572 = vmatmul.f32.gmra.mxu0 %v461
        %v573 = vpop.f32.mrf.mxu0
        %v574 = vadd.f32 %v320, %v573
        %575 = vmatmul.f32.gmra.mxu0 %v464
        %v576 = vpop.f32.mrf.mxu0
        %v577 = vadd.f32 %v325, %v576
        %578 = vmatmul.f32.gmra.mxu0 %v467
        %v579 = vpop.f32.mrf.mxu0
        %v580 = vadd.f32 %v330, %v579
        %581 = vmatmul.f32.gmra.mxu0 %v470
        %v582 = vpop.f32.mrf.mxu0
        %v583 = vadd.f32 %v335, %v582
        %584 = vmatmul.f32.gmra.mxu0 %v473
        %v585 = vpop.f32.mrf.mxu0
        %v586 = vadd.f32 %v340, %v585
        %587 = vmatmul.f32.gmra.mxu0 %v476
        %v588 = vpop.f32.mrf.mxu0
        %v589 = vadd.f32 %v345, %v588
        %590 = vmatmul.f32.gmra.mxu0 %v479
        %v591 = vpop.f32.mrf.mxu0
        %v592 = vadd.f32 %v350, %v591
        %593 = vmatmul.f32.gmra.mxu0 %v482
        %v594 = vpop.f32.mrf.mxu0
        %v595 = vadd.f32 %v355, %v594
        %596 = vmatmul.f32.gmra.mxu0 %v485
        %v597 = vpop.f32.mrf.mxu0
        %v598 = vadd.f32 %v360, %v597
        %599 = vmatmul.f32.gmra.mxu0 %v488
        %v600 = vpop.f32.mrf.mxu0
        %v601 = vadd.f32 %v365, %v600
        %602 = vmatmul.f32.gmra.mxu0 %v491
        %v603 = vpop.f32.mrf.mxu0
        %v604 = vadd.f32 %v370, %v603
        %605 = vmatmul.f32.gmra.mxu0 %v494
        %v606 = vpop.f32.mrf.mxu0
        %v607 = vadd.f32 %v375, %v606
        %608 = vmatmul.f32.gmra.mxu0 %v497
        %v609 = vpop.f32.mrf.mxu0
        %v610 = vadd.f32 %v380, %v609
        %611 = vmatmul.f32.gmra.mxu0 %v500
        %v612 = vpop.f32.mrf.mxu0
        %v613 = vadd.f32 %v385, %v612
        %614 = vmatmul.f32.gmra.mxu0 %v503
        %v615 = vpop.f32.mrf.mxu0
        %v616 = vadd.f32 %v390, %v615
        %617 = vmatmul.f32.gmra.mxu0 %v506
        %v618 = vpop.f32.mrf.mxu0
        %v619 = vadd.f32 %v395, %v618
        %620 = vmatmul.f32.gmra.mxu0 %v509
        %v621 = vpop.f32.mrf.mxu0
        %v622 = vadd.f32 %v400, %v621
        %623 = vmatmul.f32.gmra.mxu0 %v512
        %v624 = vpop.f32.mrf.mxu0
        %v625 = vadd.f32 %v405, %v624
        %626 = vmatmul.f32.gmra.mxu0 %v515
        %v627 = vpop.f32.mrf.mxu0
        %v628 = vadd.f32 %v410, %v627
        %629 = vmatmul.f32.gmra.mxu0 %v518
        %v630 = vpop.f32.mrf.mxu0
        %v631 = vadd.f32 %v415, %v630
        %632 = vmatmul.f32.gmra.mxu0 %v521
        %v633 = vpop.f32.mrf.mxu0
        %v634 = vadd.f32 %v420, %v633
        %635 = vmatmul.f32.gmra.mxu0 %v524
        %v636 = vpop.f32.mrf.mxu0
        %v637 = vadd.f32 %v425, %v636
        %638 = vmatmul.f32.gmra.mxu0 %v527
        %v639 = vpop.f32.mrf.mxu0
        %v640 = vadd.f32 %v430, %v639
        %641 = vdwg.mxu0
        %642 = vmatpush.msra.mxu0 0.0
        %643 = vmatpush.msra.mxu0 0.0
        %644 = vmatpush.msra.mxu0 0.0
        %645 = vmatpush.msra.mxu0 0.0
        %646 = vmatpush.msra.mxu0 0.0
        %647 = vmatpush.msra.mxu0 0.0
        %648 = vmatpush.msra.mxu0 0.0
        %649 = vmatpush.msra.mxu0 0.0
        %650 = vmatpush.msra.mxu0 0.0
        %651 = vmatpush.msra.mxu0 0.0
        %652 = vmatpush.msra.mxu0 0.0
        %653 = vmatpush.msra.mxu0 0.0
        %654 = vmatpush.msra.mxu0 %v239
        %655 = vmatpush.msra.mxu0 %v237
        %656 = vmatpush.msra.mxu0 %v235
        %657 = vmatpush.msra.mxu0 %v233
        %658 = vmatmul.f32.gmra.mxu0 %v434
        %v659 = vpop.f32.mrf.mxu0
        %v660 = vadd.f32 %v275, %v659
        %661 = vmatmul.f32.gmra.mxu0 %v437
        %v662 = vpop.f32.mrf.mxu0
        %v663 = vadd.f32 %v280, %v662
        %664 = vmatmul.f32.gmra.mxu0 %v440
        %v665 = vpop.f32.mrf.mxu0
        %v666 = vadd.f32 %v285, %v665
        %667 = vmatmul.f32.gmra.mxu0 %v443
        %v668 = vpop.f32.mrf.mxu0
        %v669 = vadd.f32 %v290, %v668
        %670 = vmatmul.f32.gmra.mxu0 %v446
        %v671 = vpop.f32.mrf.mxu0
        %v672 = vadd.f32 %v295, %v671
        %673 = vmatmul.f32.gmra.mxu0 %v449
        %v674 = vpop.f32.mrf.mxu0
        %v675 = vadd.f32 %v300, %v674
        %676 = vmatmul.f32.gmra.mxu0 %v452
        %v677 = vpop.f32.mrf.mxu0
        %v678 = vadd.f32 %v305, %v677
        %679 = vmatmul.f32.gmra.mxu0 %v455
        %v680 = vpop.f32.mrf.mxu0
        %v681 = vadd.f32 %v310, %v680
        %682 = vmatmul.f32.gmra.mxu0 %v458
        %v683 = vpop.f32.mrf.mxu0
        %v684 = vadd.f32 %v315, %v683
        %685 = vmatmul.f32.gmra.mxu0 %v461
        %v686 = vpop.f32.mrf.mxu0
        %v687 = vadd.f32 %v320, %v686
        %688 = vmatmul.f32.gmra.mxu0 %v464
        %v689 = vpop.f32.mrf.mxu0
        %v690 = vadd.f32 %v325, %v689
        %691 = vmatmul.f32.gmra.mxu0 %v467
        %v692 = vpop.f32.mrf.mxu0
        %v693 = vadd.f32 %v330, %v692
        %694 = vmatmul.f32.gmra.mxu0 %v470
        %v695 = vpop.f32.mrf.mxu0
        %v696 = vadd.f32 %v335, %v695
        %697 = vmatmul.f32.gmra.mxu0 %v473
        %v698 = vpop.f32.mrf.mxu0
        %v699 = vadd.f32 %v340, %v698
        %700 = vmatmul.f32.gmra.mxu0 %v476
        %v701 = vpop.f32.mrf.mxu0
        %v702 = vadd.f32 %v345, %v701
        %703 = vmatmul.f32.gmra.mxu0 %v479
        %v704 = vpop.f32.mrf.mxu0
        %v705 = vadd.f32 %v350, %v704
        %706 = vmatmul.f32.gmra.mxu0 %v482
        %v707 = vpop.f32.mrf.mxu0
        %v708 = vadd.f32 %v355, %v707
        %709 = vmatmul.f32.gmra.mxu0 %v485
        %v710 = vpop.f32.mrf.mxu0
        %v711 = vadd.f32 %v360, %v710
        %712 = vmatmul.f32.gmra.mxu0 %v488
        %v713 = vpop.f32.mrf.mxu0
        %v714 = vadd.f32 %v365, %v713
        %715 = vmatmul.f32.gmra.mxu0 %v491
        %v716 = vpop.f32.mrf.mxu0
        %v717 = vadd.f32 %v370, %v716
        %718 = vmatmul.f32.gmra.mxu0 %v494
        %v719 = vpop.f32.mrf.mxu0
        %v720 = vadd.f32 %v375, %v719
        %721 = vmatmul.f32.gmra.mxu0 %v497
        %v722 = vpop.f32.mrf.mxu0
        %v723 = vadd.f32 %v380, %v722
        %724 = vmatmul.f32.gmra.mxu0 %v500
        %v725 = vpop.f32.mrf.mxu0
        %v726 = vadd.f32 %v385, %v725
        %727 = vmatmul.f32.gmra.mxu0 %v503
        %v728 = vpop.f32.mrf.mxu0
        %v729 = vadd.f32 %v390, %v728
        %730 = vmatmul.f32.gmra.mxu0 %v506
        %v731 = vpop.f32.mrf.mxu0
        %v732 = vadd.f32 %v395, %v731
        %733 = vmatmul.f32.gmra.mxu0 %v509
        %v734 = vpop.f32.mrf.mxu0
        %v735 = vadd.f32 %v400, %v734
        %736 = vmatmul.f32.gmra.mxu0 %v512
        %v737 = vpop.f32.mrf.mxu0
        %v738 = vadd.f32 %v405, %v737
        %739 = vmatmul.f32.gmra.mxu0 %v515
        %v740 = vpop.f32.mrf.mxu0
        %v741 = vadd.f32 %v410, %v740
        %742 = vmatmul.f32.gmra.mxu0 %v518
        %v743 = vpop.f32.mrf.mxu0
        %v744 = vadd.f32 %v415, %v743
        %745 = vmatmul.f32.gmra.mxu0 %v521
        %v746 = vpop.f32.mrf.mxu0
        %v747 = vadd.f32 %v420, %v746
        %748 = vmatmul.f32.gmra.mxu0 %v524
        %v749 = vpop.f32.mrf.mxu0
        %v750 = vadd.f32 %v425, %v749
        %751 = vmatmul.f32.gmra.mxu0 %v527
        %v752 = vpop.f32.mrf.mxu0
        %v753 = vadd.f32 %v430, %v752
        %754 = vdwg.mxu0
        %755 = vst [vmem:[%s188] sm:$0xff] %v547
        %756 = vst [vmem:[%s188 + $0x8] sm:$0xff] %v660
        %757 = vst [vmem:[%s188 + $0x10] sm:$0xff] %v550
        %758 = vst [vmem:[%s188 + $0x18] sm:$0xff] %v663
        %759 = vst [vmem:[%s188 + $0x20] sm:$0xff] %v553
        %760 = vst [vmem:[%s188 + $0x28] sm:$0xff] %v666
        %761 = vst [vmem:[%s188 + $0x30] sm:$0xff] %v556
        %762 = vst [vmem:[%s188 + $0x38] sm:$0xff] %v669
        %763 = vst [vmem:[%s188 + $0x40] sm:$0xff] %v559
        %764 = vst [vmem:[%s188 + $0x48] sm:$0xff] %v672
        %765 = vst [vmem:[%s188 + $0x50] sm:$0xff] %v562
        %766 = vst [vmem:[%s188 + $0x58] sm:$0xff] %v675
        %767 = vst [vmem:[%s188 + $0x60] sm:$0xff] %v565
        %768 = vst [vmem:[%s188 + $0x68] sm:$0xff] %v678
        %769 = vst [vmem:[%s188 + $0x70] sm:$0xff] %v568
        %770 = vst [vmem:[%s188 + $0x78] sm:$0xff] %v681
        %771 = vst [vmem:[%s188 + $0x80] sm:$0xff] %v571
        %772 = vst [vmem:[%s188 + $0x88] sm:$0xff] %v684
        %773 = vst [vmem:[%s188 + $0x90] sm:$0xff] %v574
        %774 = vst [vmem:[%s188 + $0x98] sm:$0xff] %v687
        %775 = vst [vmem:[%s188 + $0xa0] sm:$0xff] %v577
        %776 = vst [vmem:[%s188 + $0xa8] sm:$0xff] %v690
        %777 = vst [vmem:[%s188 + $0xb0] sm:$0xff] %v580
        %778 = vst [vmem:[%s188 + $0xb8] sm:$0xff] %v693
        %779 = vst [vmem:[%s188 + $0xc0] sm:$0xff] %v583
        %780 = vst [vmem:[%s188 + $0xc8] sm:$0xff] %v696
        %781 = vst [vmem:[%s188 + $0xd0] sm:$0xff] %v586
        %782 = vst [vmem:[%s188 + $0xd8] sm:$0xff] %v699
        %783 = vst [vmem:[%s188 + $0xe0] sm:$0xff] %v589
        %784 = vst [vmem:[%s188 + $0xe8] sm:$0xff] %v702
        %785 = vst [vmem:[%s188 + $0xf0] sm:$0xff] %v592
        %786 = vst [vmem:[%s188 + $0xf8] sm:$0xff] %v705
        %787 = vst [vmem:[%s188 + $0x100] sm:$0xff] %v595
        %788 = vst [vmem:[%s188 + $0x108] sm:$0xff] %v708
        %789 = vst [vmem:[%s188 + $0x110] sm:$0xff] %v598
        %790 = vst [vmem:[%s188 + $0x118] sm:$0xff] %v711
        %791 = vst [vmem:[%s188 + $0x120] sm:$0xff] %v601
        %792 = vst [vmem:[%s188 + $0x128] sm:$0xff] %v714
        %793 = vst [vmem:[%s188 + $0x130] sm:$0xff] %v604
        %794 = vst [vmem:[%s188 + $0x138] sm:$0xff] %v717
        %795 = vst [vmem:[%s188 + $0x140] sm:$0xff] %v607
        %796 = vst [vmem:[%s188 + $0x148] sm:$0xff] %v720
        %797 = vst [vmem:[%s188 + $0x150] sm:$0xff] %v610
        %798 = vst [vmem:[%s188 + $0x158] sm:$0xff] %v723
        %799 = vst [vmem:[%s188 + $0x160] sm:$0xff] %v613
        %800 = vst [vmem:[%s188 + $0x168] sm:$0xff] %v726
        %801 = vst [vmem:[%s188 + $0x170] sm:$0xff] %v616
        %802 = vst [vmem:[%s188 + $0x178] sm:$0xff] %v729
        %803 = vst [vmem:[%s188 + $0x180] sm:$0xff] %v619
        %804 = vst [vmem:[%s188 + $0x188] sm:$0xff] %v732
        %805 = vst [vmem:[%s188 + $0x190] sm:$0xff] %v622
        %806 = vst [vmem:[%s188 + $0x198] sm:$0xff] %v735
        %807 = vst [vmem:[%s188 + $0x1a0] sm:$0xff] %v625
        %808 = vst [vmem:[%s188 + $0x1a8] sm:$0xff] %v738
        %809 = vst [vmem:[%s188 + $0x1b0] sm:$0xff] %v628
        %810 = vst [vmem:[%s188 + $0x1b8] sm:$0xff] %v741
        %811 = vst [vmem:[%s188 + $0x1c0] sm:$0xff] %v631
        %812 = vst [vmem:[%s188 + $0x1c8] sm:$0xff] %v744
        %813 = vst [vmem:[%s188 + $0x1d0] sm:$0xff] %v634
        %814 = vst [vmem:[%s188 + $0x1d8] sm:$0xff] %v747
        %815 = vst [vmem:[%s188 + $0x1e0] sm:$0xff] %v637
        %816 = vst [vmem:[%s188 + $0x1e8] sm:$0xff] %v750
        %817 = vst [vmem:[%s188 + $0x1f0] sm:$0xff] %v640
        %818 = vst [vmem:[%s188 + $0x1f8] sm:$0xff] %v753
        %s819 = sand.u32 %s109, 1
        %s820 = scalar_lea.sflag [#allocation3], %s819
        %s821 = sand.u32 %s109, 1
        %s822 = smul.addr %s821, 512
        %s823 = scalar_lea.vmem [#allocation2], %s822
        // Predicated region
        $region33: #{tpu_custom_call.1} parent=31 // pred_check
          %p824 = pneg %p119
        $region34: #{tpu_custom_call.1} parent=31 // pred_check_branch
          %826 = sbr.rel (%p824) target = $region36
        $region35: #{tpu_custom_call.1} parent=31 // pred_region
          %s827 = smul.u32 2, %s22
          %829 = vsyncadd %s820, 0
          %s830 = smul.addr %s21, 64
          %s831 = sadd.s32 %s827, %s830
          %s832 = smul.addr %s831, 8
          %s833 = scalar_lea.hbm %s3, %s832
          %s834 = sshll.u32 %s823, 4
          %s835 = int_to_ptr.vmem [resolvable:$true] %s834
          %s836 = sshll.u32 %s833, 4
          %s837 = int_to_ptr.hbm [resolvable:$true] %s836
          %842 = dma.vmem_to_hbm [thread:$0]  %s835, 8192, %s837, %s820, 256, 256, 16
        $region36: #{tpu_custom_call.1} parent=31 // pred_fallthru
          _
      $region32: #{tpu_custom_call.1} parent=5 // pred_fallthru
        _
      %p843 = scmp.le.s32.totalorder 2, %s12
      // Predicated region
      $region37: #{tpu_custom_call.1} parent=5 // pred_check
        %p844 = pneg %p843
      $region38: #{tpu_custom_call.1} parent=5 // pred_check_branch
        %846 = sbr.rel (%p844) target = $region40
      $region39: #{tpu_custom_call.1} parent=5 // pred_region
        %s847 = ssub.s32 %s12, 2
        // Predicated region
        $region41: #{tpu_custom_call.1} parent=39 // pred_check
          %p848 = pneg %p125
        $region42: #{tpu_custom_call.1} parent=39 // pred_check_branch
          %850 = sbr.rel (%p848) target = $region44
        $region43: #{tpu_custom_call.1} parent=39 // pred_region
          %s851 = sand.u32 %s110, 1
          %s852 = scalar_lea.sflag [#allocation3], %s851
          %s853 = sand.u32 %s110, 1
          %s854 = smul.addr %s853, 512
          %s855 = scalar_lea.vmem [#allocation2], %s854
          %857 = dma.done %s852, 8192
        $region44: #{tpu_custom_call.1} parent=39 // pred_fallthru
          _
      $region40: #{tpu_custom_call.1} parent=5 // pred_fallthru
        _
    $region6: #{tpu_custom_call.1} parent=1 // loop_footer
      %s16 = sadd.s32 1, %s12
    $region7: #{tpu_custom_call.1} parent=1 // loop_footer_branch
      %11 = sbr.rel target = $region3
    $region8: #{tpu_custom_call.1} parent=1 // loop_exit
      _
    %858 = vsyncpa [#allocation3], 1
    %s859 = scalar_lea.sflag [#allocation3], 1
    %860 = vsyncpa %s859, 1

</llo_original>
